<compile_context>
chip_gen: v7x
topology: tpu7x:2x2x1
jax: 0.10.0
libtpu: 0.0.40
codegen_flags: <defaults>
</compile_context>

<pallas_src>
import math

import jax
import jax.numpy as jnp
from jax.experimental import pallas as pl
from jax.experimental.pallas import tpu as pltpu


def _vmem_budget_bytes():
    """Scoped-VMEM budget: 75% of chip VMEM capped at 100 MiB, 48 MiB fallback."""
    cap = 64 << 20
    try:
        cap = int(pltpu.get_tpu_info().vmem_capacity_bytes)
    except Exception:
        pass
    return min((cap * 3) // 4, 100 << 20)


def _make_attention_kernel(with_mask, with_weights):
    """Kernel for one (batch-block, kv-tile) grid step.

    Grid = (batch_blocks, kv_blocks); kv axis is a reduction handled with an
    online (flash-style) softmax held in VMEM scratch.  When `with_weights`,
    the wrapper guarantees kv_blocks == 1 so normalized probabilities can be
    emitted directly.
    """

    def kernel(*refs):
        it = iter(refs)
        q_ref, k_ref, v_ref = next(it), next(it), next(it)
        mask_ref = next(it) if with_mask else None
        wq_t_ref, bq_ref, wk_t_ref, bk_ref = next(it), next(it), next(it), next(it)
        out_ref = next(it)
        attn_ref = next(it) if with_weights else None
        qp_sc, m_sc, l_sc, acc_sc = next(it), next(it), next(it), next(it)

        j = pl.program_id(1)
        tb, lq, d = q_ref.shape
        tk = k_ref.shape[1]

        # Once per batch block: project q (1/sqrt(D) already folded into W_q),
        # reset the online-softmax state.
        @pl.when(j == 0)
        def _():
            q = q_ref[...]
            qp = jnp.dot(q.reshape(tb * lq, d), wq_t_ref[...],
                         preferred_element_type=jnp.float32) + bq_ref[...]
            qp_sc[...] = qp.reshape(tb, lq, d).astype(qp_sc.dtype)
            m_sc[...] = jnp.full(m_sc.shape, -jnp.inf, m_sc.dtype)
            l_sc[...] = jnp.zeros(l_sc.shape, l_sc.dtype)
            acc_sc[...] = jnp.zeros(acc_sc.shape, acc_sc.dtype)

        # Project this key tile: (TB*TK, D) x (D, D) on the MXU.
        k = k_ref[...]
        kp = (jnp.dot(k.reshape(tb * tk, d), wk_t_ref[...],
                      preferred_element_type=jnp.float32)
              + bk_ref[...]).reshape(tb, tk, d).astype(qp_sc.dtype)

        # Scores: contract last dims of both operands (no transpose needed).
        s = jnp.einsum("bqd,bkd->bqk", qp_sc[...], kp,
                       preferred_element_type=jnp.float32)      # (TB, Lq, TK)

        if with_mask:
            # torch: s*mask then masked_fill(mask==0, -1e9); for {0,1} masks
            # this single fused multiply-add is exactly equivalent (including
            # fully-masked rows -> uniform softmax).
            m = mask_ref[...]                                    # (TB, 1, TK)
            s = s * m + (m - 1.0) * jnp.float32(1e9)

        # Online softmax update.
        m_prev = m_sc[...]
        m_new = jnp.maximum(m_prev, jnp.max(s, axis=-1, keepdims=True))
        alpha = jnp.exp(m_prev - m_new)
        p = jnp.exp(s - m_new)
        l_sc[...] = alpha * l_sc[...] + jnp.sum(p, axis=-1, keepdims=True)
        acc_sc[...] = alpha * acc_sc[...] + jnp.einsum(
            "bqk,bkd->bqd", p.astype(v_ref.dtype), v_ref[...],
            preferred_element_type=jnp.float32)
        m_sc[...] = m_new

        # Finalize on the last kv tile.
        @pl.when(j == pl.num_programs(1) - 1)
        def _():
            inv_l = pl.reciprocal(l_sc[...], approx=True)   # EUP slot; ~1e-3
            out_ref[...] = (acc_sc[...] * inv_l).astype(out_ref.dtype)
            if with_weights:
                # Single kv step guaranteed -> p covers the whole key axis.
                attn_ref[...] = (p * inv_l).astype(attn_ref.dtype)

    return kernel


def attention_forward(query, key, value, w_q, b_q, w_k, b_k, mask=None, *,
                      return_attn_weights=False, compute_dtype=None,
                      kv_block=512):
    """query: (B, Lq, D); key/value: (B, Lk, D); w_*: (D, D); b_*: (D,);
    mask: optional (B, Lk) {0,1} floats.

    Returns attn_out (B, Lq, D) in the input dtype, and additionally the f32
    attn_weights (B, Lq, Lk) when return_attn_weights=True.  compute_dtype
    (e.g. jnp.bfloat16) casts MXU operands on the host (f32 accumulation kept).
    """
    B, Lq, D = query.shape
    Lk = key.shape[1]
    out_dtype = query.dtype
    cdt = jnp.dtype(compute_dtype) if compute_dtype is not None else jnp.dtype(out_dtype)
    scale = 1.0 / math.sqrt(D)

    # Host-side prep: pre-transpose weights to (D_in, D_out), fold the
    # 1/sqrt(D) softmax scale into W_q / b_q, cast MXU operands.
    wq_t = (w_q.T * scale).astype(cdt)
    bq2 = (b_q * scale).reshape(1, D).astype(jnp.float32)
    wk_t = w_k.T.astype(cdt)
    bk2 = b_k.reshape(1, D).astype(jnp.float32)
    q_in = query.astype(cdt)
    k_in = key.astype(cdt)
    v_in = value.astype(cdt)

    with_mask = mask is not None
    with_weights = bool(return_attn_weights)

    # KV tile: full Lk when weights are requested (need the whole row),
    # otherwise the largest 128-multiple divisor of Lk up to kv_block.
    if with_weights or Lk <= kv_block:
        TK = Lk
    else:
        TK = Lk
        for t in range(kv_block - kv_block % 128, 0, -128):
            if Lk % t == 0:
                TK = t
                break
    nk = Lk // TK

    vmem_cap = _vmem_budget_bytes()
    tile_budget = int(vmem_cap * 0.8)          # headroom for compiler scratch
    in_bytes = jnp.dtype(cdt).itemsize
    out_bytes = jnp.dtype(out_dtype).itemsize

    def _tile_bytes(tb):
        blocks = 2 * tb * (Lq * D + 2 * TK * D) * in_bytes       # q, k, v (dbuf)
        blocks += 2 * tb * Lq * D * out_bytes                    # out (dbuf)
        if with_mask:
            blocks += 2 * tb * TK * 4
        if with_weights:
            blocks += 2 * tb * Lq * Lk * 4
        blocks += 2 * (2 * D * D * in_bytes + 2 * D * 4)         # weights/biases
        scratch = tb * (Lq * D * in_bytes + Lq * D * 4 + 2 * Lq * 4)
        interm = tb * (TK * D + 3 * Lq * TK + Lq * D) * 4        # kp, s, p, pv
        return blocks + scratch + interm

    # Fold batches per grid step: target ~256 M-rows for the 256-wide MXU of
    # v6e/v7x (two 128-row passes on v5e), cap by the VMEM budget, and keep
    # >= 2 batch grid steps when possible so both v7x TensorCores get work.
    target_rows = 256
    tb = max(1, min(B, target_rows // max(Lq, 1)))
    while tb > 1 and B % tb != 0:
        tb -= 1
    while tb > 1 and _tile_bytes(tb) > tile_budget:
        tb -= 1
        while tb > 1 and B % tb != 0:
            tb -= 1
    while tb > 1 and B // tb < 2:
        nt = tb - 1
        while nt > 1 and B % nt != 0:
            nt -= 1
        tb = nt
    nb = B // tb
    grid = (nb, nk)

    in_specs = [
        pl.BlockSpec((tb, Lq, D), lambda b, j: (b, 0, 0)),     # query
        pl.BlockSpec((tb, TK, D), lambda b, j: (b, j, 0)),     # key tile
        pl.BlockSpec((tb, TK, D), lambda b, j: (b, j, 0)),     # value tile
    ]
    args = [q_in, k_in, v_in]
    if with_mask:
        mask3 = jnp.asarray(mask, jnp.float32).reshape(B, 1, Lk)
        in_specs.append(pl.BlockSpec((tb, 1, TK), lambda b, j: (b, 0, j)))
        args.append(mask3)
    in_specs += [
        pl.BlockSpec((D, D), lambda b, j: (0, 0)),             # W_q^T (pre-scaled)
        pl.BlockSpec((1, D), lambda b, j: (0, 0)),             # b_q   (pre-scaled)
        pl.BlockSpec((D, D), lambda b, j: (0, 0)),             # W_k^T
        pl.BlockSpec((1, D), lambda b, j: (0, 0)),             # b_k
    ]
    args += [wq_t, bq2, wk_t, bk2]

    out_shapes = [jax.ShapeDtypeStruct((B, Lq, D), out_dtype)]
    out_specs = [pl.BlockSpec((tb, Lq, D), lambda b, j: (b, 0, 0))]
    if with_weights:
        out_shapes.append(jax.ShapeDtypeStruct((B, Lq, Lk), jnp.float32))
        out_specs.append(pl.BlockSpec((tb, Lq, Lk), lambda b, j: (b, 0, 0)))

    scratch_shapes = [
        pltpu.VMEM((tb, Lq, D), cdt),           # projected q (per batch block)
        pltpu.VMEM((tb, Lq, 1), jnp.float32),   # running max
        pltpu.VMEM((tb, Lq, 1), jnp.float32),   # running denominator
        pltpu.VMEM((tb, Lq, D), jnp.float32),   # output accumulator
    ]

    outs = pl.pallas_call(
        _make_attention_kernel(with_mask, with_weights),
        out_shape=tuple(out_shapes),
        grid_spec=pltpu.PrefetchScalarGridSpec(
            num_scalar_prefetch=0,
            grid=grid,
            in_specs=tuple(in_specs),
            out_specs=tuple(out_specs),
            scratch_shapes=tuple(scratch_shapes)),
        compiler_params=pltpu.CompilerParams(
            dimension_semantics=("parallel", "arbitrary"),
            vmem_limit_bytes=int(vmem_cap)),
    )(*args)

    if with_weights:
        return outs[0], outs[1]
    return outs[0] if isinstance(outs, (tuple, list)) else outs


def _reference(query, key, value, w_q, b_q, w_k, b_k, mask=None):
    """High-precision pure-JAX reference (matches the PyTorch forward)."""
    hp = jax.lax.Precision.HIGHEST
    D = query.shape[-1]
    q = jnp.einsum("bld,od->blo", query, w_q, precision=hp) + b_q
    k = jnp.einsum("bld,od->blo", key, w_k, precision=hp) + b_k
    s = jnp.einsum("bqd,bkd->bqk", q, k, precision=hp) / math.sqrt(D)
    if mask is not None:
        m = jnp.asarray(mask, jnp.float32).reshape(query.shape[0], 1, key.shape[1])
        s = s * m
        s = jnp.where(m == 0.0, -1e9, s)
    p = jax.nn.softmax(s, axis=-1)
    out = jnp.einsum("bqk,bkd->bqd", p, value, precision=hp)
    return out, p


if __name__ == "__main__":
    B, Lq, Lk, D = 2, 8, 8, 32

    ks = jax.random.split(jax.random.PRNGKey(0), 8)
    bound = 1.0 / math.sqrt(D)
    w_q = jax.random.uniform(ks[0], (D, D), jnp.float32, -bound, bound)
    b_q = jax.random.uniform(ks[1], (D,), jnp.float32, -bound, bound)
    w_k = jax.random.uniform(ks[2], (D, D), jnp.float32, -bound, bound)
    b_k = jax.random.uniform(ks[3], (D,), jnp.float32, -bound, bound)

    query = jax.random.normal(ks[4], (B, Lq, D), jnp.float32)
    key_t = jax.random.normal(ks[5], (B, Lk, D), jnp.float32)
    value = jax.random.normal(ks[6], (B, Lk, D), jnp.float32)

    mask = (jax.random.uniform(ks[7], (B, Lk)) > 0.3).astype(jnp.float32)
    mask = mask.at[:, 0].set(1.0)   # keep at least one unmasked key per row

    # Tolerances cover MXU / approx-reciprocal rounding vs. the f32 reference.
    TOL = dict(atol=2e-2, rtol=2e-2)

    ref_out, ref_w = _reference(query, key_t, value, w_q, b_q, w_k, b_k)
    ref_out_m, ref_w_m = _reference(query, key_t, value, w_q, b_q, w_k, b_k, mask=mask)

    # 1) Default fast path: no mask, no attn_weights output (flash path).
    out1 = attention_forward(query, key_t, value, w_q, b_q, w_k, b_k)
    out1 = jax.block_until_ready(out1)
    assert out1.shape == (B, Lq, D)
    assert jnp.allclose(out1, ref_out, **TOL), "attn_out mismatch (no mask)"

    # 2) attn_weights requested, no mask.
    out2, w2 = attention_forward(query, key_t, value, w_q, b_q, w_k, b_k,
                                 return_attn_weights=True)
    jax.block_until_ready(out2); jax.block_until_ready(w2)
    assert jnp.allclose(out2, ref_out, **TOL), "attn_out mismatch (weights path)"
    assert jnp.allclose(w2, ref_w, **TOL), "attn_weights mismatch"

    # 3) Masked, fast path.
    out3 = attention_forward(query, key_t, value, w_q, b_q, w_k, b_k, mask=mask)
    out3 = jax.block_until_ready(out3)
    assert jnp.allclose(out3, ref_out_m, **TOL), "masked attn_out mismatch"

    # 4) Masked, attn_weights requested.
    out4, w4 = attention_forward(query, key_t, value, w_q, b_q, w_k, b_k,
                                 mask=mask, return_attn_weights=True)
    jax.block_until_ready(out4); jax.block_until_ready(w4)
    assert jnp.allclose(out4, ref_out_m, **TOL), "masked attn_out mismatch (weights)"
    assert jnp.allclose(w4, ref_w_m, **TOL), "masked attn_weights mismatch"

    # 5) bf16 MXU operands (f32 accumulation) — reduced-precision smoke test.
    out5 = attention_forward(query, key_t, value, w_q, b_q, w_k, b_k,
                             mask=mask, compute_dtype=jnp.bfloat16)
    out5 = jax.block_until_ready(out5)
    assert jnp.allclose(out5.astype(jnp.float32), ref_out_m, atol=8e-2, rtol=8e-2), \
        "bf16-operand attn_out mismatch"

    print("KERNEL_OK")
</pallas_src>

<mosaic_0001>
module attributes {stable_mosaic.version = 11 : i64} {
  func.func @kernel(%arg0: i32, %arg1: i32, %arg2: memref<1x8x32xf32, #tpu.memory_space<vmem>>, %arg3: memref<1x8x32xf32, #tpu.memory_space<vmem>>, %arg4: memref<1x8x32xf32, #tpu.memory_space<vmem>>, %arg5: memref<32x32xf32, #tpu.memory_space<vmem>>, %arg6: memref<1x32xf32, #tpu.memory_space<vmem>>, %arg7: memref<32x32xf32, #tpu.memory_space<vmem>>, %arg8: memref<1x32xf32, #tpu.memory_space<vmem>>, %arg9: memref<1x8x32xf32, #tpu.memory_space<vmem>>, %arg10: memref<1x8x32xf32, #tpu.memory_space<vmem>>, %arg11: memref<1x8x1xf32, #tpu.memory_space<vmem>>, %arg12: memref<1x8x1xf32, #tpu.memory_space<vmem>>, %arg13: memref<1x8x32xf32, #tpu.memory_space<vmem>>) attributes {dimension_semantics = [#tpu.dimension_semantics<parallel>, #tpu.dimension_semantics<arbitrary>], iteration_bounds = array<i64: 2, 1>, scalar_prefetch = 0 : i64, scratch_operands = 4 : i64, tpu.core_type = #tpu.core_type<tc>, window_params = [{transform_indices = @transform_0, window_bounds = array<i64: 1, 8, 32>}, {transform_indices = @transform_1, window_bounds = array<i64: 1, 8, 32>}, {transform_indices = @transform_2, window_bounds = array<i64: 1, 8, 32>}, {pipeline_mode = #tpu.pipeline_mode<synchronous>, transform_indices = @transform_3, window_bounds = array<i64: 32, 32>}, {pipeline_mode = #tpu.pipeline_mode<synchronous>, transform_indices = @transform_4, window_bounds = array<i64: 1, 32>}, {pipeline_mode = #tpu.pipeline_mode<synchronous>, transform_indices = @transform_5, window_bounds = array<i64: 32, 32>}, {pipeline_mode = #tpu.pipeline_mode<synchronous>, transform_indices = @transform_6, window_bounds = array<i64: 1, 32>}, {transform_indices = @transform_7, window_bounds = array<i64: 1, 8, 32>}]} {
    %c0_i32 = arith.constant 0 : i32
    %0 = arith.cmpi eq, %arg1, %c0_i32 : i32
    %1 = arith.extui %0 : i1 to i32
    %c0_i32_0 = arith.constant 0 : i32
    %2 = arith.cmpi ne, %1, %c0_i32_0 : i32
    scf.if %2 {
      %c0_37 = arith.constant 0 : index
      %c0_38 = arith.constant 0 : index
      %c0_39 = arith.constant 0 : index
      %39 = vector.load %arg2[%c0_37, %c0_38, %c0_39] : memref<1x8x32xf32, #tpu.memory_space<vmem>>, vector<1x8x32xf32>
      %40 = vector.shape_cast %39 : vector<1x8x32xf32> to vector<8x32xf32>
      %c0_40 = arith.constant 0 : index
      %c0_41 = arith.constant 0 : index
      %41 = vector.load %arg5[%c0_40, %c0_41] : memref<32x32xf32, #tpu.memory_space<vmem>>, vector<32x32xf32>
      %cst_42 = arith.constant dense<0.000000e+00> : vector<8x32xf32>
      %42 = tpu.matmul %40, %41, %cst_42 {dimension_numbers = #tpu.dot_dimension_numbers<[1], [0], [0], [1], [0, 0, 1, 1], [], []>} : vector<8x32xf32>, vector<32x32xf32>, vector<8x32xf32> -> vector<8x32xf32>
      %c0_43 = arith.constant 0 : index
      %c0_44 = arith.constant 0 : index
      %43 = vector.load %arg6[%c0_43, %c0_44] : memref<1x32xf32, #tpu.memory_space<vmem>>, vector<1x32xf32>
      %44 = vector.broadcast %43 : vector<1x32xf32> to vector<8x32xf32>
      %45 = arith.addf %42, %44 : vector<8x32xf32>
      %46 = vector.shape_cast %45 : vector<8x32xf32> to vector<1x8x32xf32>
      %c0_45 = arith.constant 0 : index
      %c0_46 = arith.constant 0 : index
      %c0_47 = arith.constant 0 : index
      %47 = vector.load %arg10[%c0_45, %c0_46, %c0_47] : memref<1x8x32xf32, #tpu.memory_space<vmem>>, vector<1x8x32xf32>
      tpu.vector_store %arg10[%c0_45, %c0_46, %c0_47], %46 {strides = array<i32>} : memref<1x8x32xf32, #tpu.memory_space<vmem>>, vector<1x8x32xf32>,
      %cst_48 = arith.constant 0xFF800000 : f32
      %48 = vector.broadcast %cst_48 : f32 to vector<1x8x1xf32>
      %c0_49 = arith.constant 0 : index
      %c0_50 = arith.constant 0 : index
      %c0_51 = arith.constant 0 : index
      %49 = vector.load %arg11[%c0_49, %c0_50, %c0_51] : memref<1x8x1xf32, #tpu.memory_space<vmem>>, vector<1x8x1xf32>
      tpu.vector_store %arg11[%c0_49, %c0_50, %c0_51], %48 {strides = array<i32>} : memref<1x8x1xf32, #tpu.memory_space<vmem>>, vector<1x8x1xf32>,
      %cst_52 = arith.constant 0.000000e+00 : f32
      %50 = vector.broadcast %cst_52 : f32 to vector<1x8x1xf32>
      %c0_53 = arith.constant 0 : index
      %c0_54 = arith.constant 0 : index
      %c0_55 = arith.constant 0 : index
      %51 = vector.load %arg12[%c0_53, %c0_54, %c0_55] : memref<1x8x1xf32, #tpu.memory_space<vmem>>, vector<1x8x1xf32>
      tpu.vector_store %arg12[%c0_53, %c0_54, %c0_55], %50 {strides = array<i32>} : memref<1x8x1xf32, #tpu.memory_space<vmem>>, vector<1x8x1xf32>,
      %cst_56 = arith.constant 0.000000e+00 : f32
      %52 = vector.broadcast %cst_56 : f32 to vector<1x8x32xf32>
      %c0_57 = arith.constant 0 : index
      %c0_58 = arith.constant 0 : index
      %c0_59 = arith.constant 0 : index
      %53 = vector.load %arg13[%c0_57, %c0_58, %c0_59] : memref<1x8x32xf32, #tpu.memory_space<vmem>>, vector<1x8x32xf32>
      tpu.vector_store %arg13[%c0_57, %c0_58, %c0_59], %52 {strides = array<i32>} : memref<1x8x32xf32, #tpu.memory_space<vmem>>, vector<1x8x32xf32>,
    } else {
    }
    %c0 = arith.constant 0 : index
    %c0_1 = arith.constant 0 : index
    %c0_2 = arith.constant 0 : index
    %3 = vector.load %arg3[%c0, %c0_1, %c0_2] : memref<1x8x32xf32, #tpu.memory_space<vmem>>, vector<1x8x32xf32>
    %4 = vector.shape_cast %3 : vector<1x8x32xf32> to vector<8x32xf32>
    %c0_3 = arith.constant 0 : index
    %c0_4 = arith.constant 0 : index
    %5 = vector.load %arg7[%c0_3, %c0_4] : memref<32x32xf32, #tpu.memory_space<vmem>>, vector<32x32xf32>
    %cst = arith.constant dense<0.000000e+00> : vector<8x32xf32>
    %6 = tpu.matmul %4, %5, %cst {dimension_numbers = #tpu.dot_dimension_numbers<[1], [0], [0], [1], [0, 0, 1, 1], [], []>} : vector<8x32xf32>, vector<32x32xf32>, vector<8x32xf32> -> vector<8x32xf32>
    %c0_5 = arith.constant 0 : index
    %c0_6 = arith.constant 0 : index
    %7 = vector.load %arg8[%c0_5, %c0_6] : memref<1x32xf32, #tpu.memory_space<vmem>>, vector<1x32xf32>
    %8 = vector.broadcast %7 : vector<1x32xf32> to vector<8x32xf32>
    %9 = arith.addf %6, %8 : vector<8x32xf32>
    %10 = vector.shape_cast %9 : vector<8x32xf32> to vector<1x8x32xf32>
    %c0_7 = arith.constant 0 : index
    %c0_8 = arith.constant 0 : index
    %c0_9 = arith.constant 0 : index
    %11 = vector.load %arg10[%c0_7, %c0_8, %c0_9] : memref<1x8x32xf32, #tpu.memory_space<vmem>>, vector<1x8x32xf32>
    "tpu.trace_start"() <{level = 10 : i32, message = "bqd,bkd->bqk"}> : () -> ()
    %cst_10 = arith.constant dense<0.000000e+00> : vector<1x8x8xf32>
    %12 = tpu.matmul %11, %10, %cst_10 {dimension_numbers = #tpu.dot_dimension_numbers<[2], [2], [1], [1], [0, 0, 0, 1, 1, 1], [0], [0]>} : vector<1x8x32xf32>, vector<1x8x32xf32>, vector<1x8x8xf32> -> vector<1x8x8xf32>
    "tpu.trace_stop"() : () -> ()
    %c0_11 = arith.constant 0 : index
    %c0_12 = arith.constant 0 : index
    %c0_13 = arith.constant 0 : index
    %13 = vector.load %arg11[%c0_11, %c0_12, %c0_13] : memref<1x8x1xf32, #tpu.memory_space<vmem>>, vector<1x8x1xf32>
    %cst_14 = arith.constant dense<0xFF800000> : vector<1x8xf32>
    %14 = vector.multi_reduction <maximumf>, %12, %cst_14 [2] : vector<1x8x8xf32> to vector<1x8xf32>
    %15 = vector.shape_cast %14 : vector<1x8xf32> to vector<1x8x1xf32>
    %16 = arith.maximumf %13, %15 : vector<1x8x1xf32>
    %17 = arith.subf %13, %16 : vector<1x8x1xf32>
    %18 = math.exp %17 : vector<1x8x1xf32>
    %19 = vector.broadcast %16 : vector<1x8x1xf32> to vector<1x8x8xf32>
    %20 = arith.subf %12, %19 : vector<1x8x8xf32>
    %21 = math.exp %20 : vector<1x8x8xf32>
    %c0_15 = arith.constant 0 : index
    %c0_16 = arith.constant 0 : index
    %c0_17 = arith.constant 0 : index
    %22 = vector.load %arg12[%c0_15, %c0_16, %c0_17] : memref<1x8x1xf32, #tpu.memory_space<vmem>>, vector<1x8x1xf32>
    %23 = arith.mulf %18, %22 : vector<1x8x1xf32>
    %cst_18 = arith.constant dense<0.000000e+00> : vector<1x8xf32>
    %24 = vector.multi_reduction <add>, %21, %cst_18 [2] : vector<1x8x8xf32> to vector<1x8xf32>
    %25 = vector.shape_cast %24 : vector<1x8xf32> to vector<1x8x1xf32>
    %26 = arith.addf %23, %25 : vector<1x8x1xf32>
    %c0_19 = arith.constant 0 : index
    %c0_20 = arith.constant 0 : index
    %c0_21 = arith.constant 0 : index
    %27 = vector.load %arg12[%c0_19, %c0_20, %c0_21] : memref<1x8x1xf32, #tpu.memory_space<vmem>>, vector<1x8x1xf32>
    tpu.vector_store %arg12[%c0_19, %c0_20, %c0_21], %26 {strides = array<i32>} : memref<1x8x1xf32, #tpu.memory_space<vmem>>, vector<1x8x1xf32>,
    %c0_22 = arith.constant 0 : index
    %c0_23 = arith.constant 0 : index
    %c0_24 = arith.constant 0 : index
    %28 = vector.load %arg13[%c0_22, %c0_23, %c0_24] : memref<1x8x32xf32, #tpu.memory_space<vmem>>, vector<1x8x32xf32>
    %29 = vector.broadcast %18 : vector<1x8x1xf32> to vector<1x8x32xf32>
    %30 = arith.mulf %29, %28 : vector<1x8x32xf32>
    %c0_25 = arith.constant 0 : index
    %c0_26 = arith.constant 0 : index
    %c0_27 = arith.constant 0 : index
    %31 = vector.load %arg4[%c0_25, %c0_26, %c0_27] : memref<1x8x32xf32, #tpu.memory_space<vmem>>, vector<1x8x32xf32>
    "tpu.trace_start"() <{level = 10 : i32, message = "bqk,bkd->bqd"}> : () -> ()
    %cst_28 = arith.constant dense<0.000000e+00> : vector<1x8x32xf32>
    %32 = tpu.matmul %21, %31, %cst_28 {dimension_numbers = #tpu.dot_dimension_numbers<[2], [1], [1], [2], [0, 0, 0, 1, 1, 2], [0], [0]>} : vector<1x8x8xf32>, vector<1x8x32xf32>, vector<1x8x32xf32> -> vector<1x8x32xf32>
    "tpu.trace_stop"() : () -> ()
    %33 = arith.addf %30, %32 : vector<1x8x32xf32>
    %c0_29 = arith.constant 0 : index
    %c0_30 = arith.constant 0 : index
    %c0_31 = arith.constant 0 : index
    %34 = vector.load %arg13[%c0_29, %c0_30, %c0_31] : memref<1x8x32xf32, #tpu.memory_space<vmem>>, vector<1x8x32xf32>
    tpu.vector_store %arg13[%c0_29, %c0_30, %c0_31], %33 {strides = array<i32>} : memref<1x8x32xf32, #tpu.memory_space<vmem>>, vector<1x8x32xf32>,
    %c0_32 = arith.constant 0 : index
    %c0_33 = arith.constant 0 : index
    %c0_34 = arith.constant 0 : index
    %35 = vector.load %arg11[%c0_32, %c0_33, %c0_34] : memref<1x8x1xf32, #tpu.memory_space<vmem>>, vector<1x8x1xf32>
    tpu.vector_store %arg11[%c0_32, %c0_33, %c0_34], %16 {strides = array<i32>} : memref<1x8x1xf32, #tpu.memory_space<vmem>>, vector<1x8x1xf32>,
    %c0_i32_35 = arith.constant 0 : i32
    %36 = arith.cmpi eq, %arg1, %c0_i32_35 : i32
    %37 = arith.extui %36 : i1 to i32
    %c0_i32_36 = arith.constant 0 : i32
    %38 = arith.cmpi ne, %37, %c0_i32_36 : i32
    scf.if %38 {
      %c0_37 = arith.constant 0 : index
      %c0_38 = arith.constant 0 : index
      %c0_39 = arith.constant 0 : index
      %39 = vector.load %arg12[%c0_37, %c0_38, %c0_39] : memref<1x8x1xf32, #tpu.memory_space<vmem>>, vector<1x8x1xf32>
      %40 = tpu.reciprocal %39 {approx = true} : vector<1x8x1xf32> -> vector<1x8x1xf32>
      %c0_40 = arith.constant 0 : index
      %c0_41 = arith.constant 0 : index
      %c0_42 = arith.constant 0 : index
      %41 = vector.load %arg13[%c0_40, %c0_41, %c0_42] : memref<1x8x32xf32, #tpu.memory_space<vmem>>, vector<1x8x32xf32>
      %42 = vector.broadcast %40 : vector<1x8x1xf32> to vector<1x8x32xf32>
      %43 = arith.mulf %41, %42 : vector<1x8x32xf32>
      %c0_43 = arith.constant 0 : index
      %c0_44 = arith.constant 0 : index
      %c0_45 = arith.constant 0 : index
      %44 = vector.load %arg9[%c0_43, %c0_44, %c0_45] : memref<1x8x32xf32, #tpu.memory_space<vmem>>, vector<1x8x32xf32>
      tpu.vector_store %arg9[%c0_43, %c0_44, %c0_45], %43 {strides = array<i32>} : memref<1x8x32xf32, #tpu.memory_space<vmem>>, vector<1x8x32xf32>,
    } else {
    }
    return
  }
  func.func @transform_0(%arg0: i32, %arg1: i32) -> (i32, i32, i32) {
    %c0_i32 = arith.constant 0 : i32
    %c0_i32_0 = arith.constant 0 : i32
    %c0_i32_1 = arith.constant 0 : i32
    return %arg0, %c0_i32, %c0_i32_0 : i32, i32, i32
  }
  func.func @transform_1(%arg0: i32, %arg1: i32) -> (i32, i32, i32) {
    %c0_i32 = arith.constant 0 : i32
    %c0_i32_0 = arith.constant 0 : i32
    return %arg0, %arg1, %c0_i32 : i32, i32, i32
  }
  func.func @transform_2(%arg0: i32, %arg1: i32) -> (i32, i32, i32) {
    %c0_i32 = arith.constant 0 : i32
    %c0_i32_0 = arith.constant 0 : i32
    return %arg0, %arg1, %c0_i32 : i32, i32, i32
  }
  func.func @transform_3(%arg0: i32, %arg1: i32) -> (i32, i32) {
    %c0_i32 = arith.constant 0 : i32
    %c0_i32_0 = arith.constant 0 : i32
    %c0_i32_1 = arith.constant 0 : i32
    return %c0_i32, %c0_i32_0 : i32, i32
  }
  func.func @transform_4(%arg0: i32, %arg1: i32) -> (i32, i32) {
    %c0_i32 = arith.constant 0 : i32
    %c0_i32_0 = arith.constant 0 : i32
    %c0_i32_1 = arith.constant 0 : i32
    return %c0_i32, %c0_i32_0 : i32, i32
  }
  func.func @transform_5(%arg0: i32, %arg1: i32) -> (i32, i32) {
    %c0_i32 = arith.constant 0 : i32
    %c0_i32_0 = arith.constant 0 : i32
    %c0_i32_1 = arith.constant 0 : i32
    return %c0_i32, %c0_i32_0 : i32, i32
  }
  func.func @transform_6(%arg0: i32, %arg1: i32) -> (i32, i32) {
    %c0_i32 = arith.constant 0 : i32
    %c0_i32_0 = arith.constant 0 : i32
    %c0_i32_1 = arith.constant 0 : i32
    return %c0_i32, %c0_i32_0 : i32, i32
  }
  func.func @transform_7(%arg0: i32, %arg1: i32) -> (i32, i32, i32) {
    %c0_i32 = arith.constant 0 : i32
    %c0_i32_0 = arith.constant 0 : i32
    %c0_i32_1 = arith.constant 0 : i32
    return %arg0, %c0_i32, %c0_i32_0 : i32, i32, i32
  }
}

</mosaic_0001>

<llo_original>
// kernel: tpu_custom_call.1
$region0: #{tpu_custom_call.1}
  #allocation0 [shape = 'u32[]', space=smem, size = 0x4, offset = 0x4, fixed_abs, tag = 'smem constant byte address 0x4 - core index']
  #allocation1 [shape = 'u32[144,128]{1,0:T(1,128)}', space=vmem, size = 0x12000, scoped, tag = 'internal scratch']
  #allocation2 [shape = 'f32[1,8,32]{2,1,0:T(8,128)}', space=vmem, size = 0x1000, scoped, tag = 'scratch operand']
  #allocation3 [shape = 'f32[1,8,1]{2,1,0:T(8,128)}', space=vmem, size = 0x1000, scoped, tag = 'scratch operand']
  #allocation4 [shape = 'f32[1,8,1]{2,1,0:T(8,128)}', space=vmem, size = 0x1000, scoped, tag = 'scratch operand']
  #allocation5 [shape = 'f32[1,8,32]{2,1,0:T(8,128)}', space=vmem, size = 0x1000, scoped, tag = 'scratch operand']
  %s0 = inlined_call_operand.hbm [shape: f32[2,8,32], index: 0, kind: input, shape index: {}]
  %s1 = inlined_call_operand.hbm [shape: f32[2,8,32], index: 1, kind: input, shape index: {}]
  %s2 = inlined_call_operand.hbm [shape: f32[2,8,32], index: 2, kind: input, shape index: {}]
  %s3 = inlined_call_operand.hbm [shape: f32[32,32], index: 3, kind: input, shape index: {}]
  %s4 = inlined_call_operand.vmem [shape: f32[1,32], index: 4, kind: input, shape index: {}]
  %s5 = inlined_call_operand.hbm [shape: f32[32,32], index: 5, kind: input, shape index: {}]
  %s6 = inlined_call_operand.vmem [shape: f32[1,32], index: 6, kind: input, shape index: {}]
  %s7 = inlined_call_operand.hbm [shape: f32[2,8,32], index: 7, kind: output, shape index: {}]
  %s8 = sld [smem:[#allocation0]]
  $region89: #{tpu_custom_call.1} parent=0
    _
  %s10 = ssub.s32 1, %s8
  %s11 = scalar_select 0, %s10, %s8
  $region1: #{tpu_custom_call.1} parent=0
    #allocation6 [shape = 'u8[8192]{0}', space=vmem, size = 0x2000, scoped, tag = 'input window, operand 0']
    #allocation7 [shape = 's32[2]{0}', space=sflag, size = 0x8, scoped, tag = 'scoped memory for tpu_custom_call.1']
    #allocation8 [shape = 's32[2]{0}', space=sflag, size = 0x8, scoped, tag = 'scoped memory for tpu_custom_call.1']
    #allocation9 [shape = 'u8[8192]{0}', space=vmem, size = 0x2000, scoped, tag = 'input window, operand 1']
    #allocation10 [shape = 's32[2]{0}', space=sflag, size = 0x8, scoped, tag = 'scoped memory for tpu_custom_call.1']
    #allocation11 [shape = 'u8[8192]{0}', space=vmem, size = 0x2000, scoped, tag = 'input window, operand 2']
    #allocation12 [shape = 'u8[16384]{0}', space=vmem, size = 0x4000, scoped, tag = 'input window, operand 3, single buffered']
    #allocation13 [shape = 's32[1]{0}', space=sflag, size = 0x4, scoped, tag = 'scoped memory for tpu_custom_call.1']
    #allocation14 [shape = 'u8[16384]{0}', space=vmem, size = 0x4000, scoped, tag = 'input window, operand 5, single buffered']
    #allocation15 [shape = 'u8[8192]{0}', space=vmem, size = 0x2000, scoped, tag = 'output window, operand 0']
    %12 = vsyncpa [#allocation7], 0
    %s13 = scalar_lea.sflag [#allocation7], 1
    %14 = vsyncpa %s13, 0
    %15 = vsyncpa [#allocation10], 0
    %s16 = scalar_lea.sflag [#allocation10], 1
    %17 = vsyncpa %s16, 0
    %18 = vsyncpa [#allocation13], 0
    %19 = vsyncpa [#allocation8], 0
    %s20 = scalar_lea.sflag [#allocation8], 1
    %21 = vsyncpa %s20, 0
    loop: start=0, step=1, limit=4
    $region2: #{tpu_custom_call.1} parent=1 // loop_pre_header
      _
    $region3: #{tpu_custom_call.1} parent=1 // loop_header
      %s23 = sphi 0, %s27
      %p24 = scmp.ge.s32.totalorder %s23, 4
      %s30 = sphi 0, %s42
      %s31 = sphi 0, %s38
      %s32 = sphi 0, %s30
      %s33 = sphi 0, %s31
      %s34 = sphi 0, %s32
      %s35 = sphi 0, %s33
      %s45 = sphi 0, %s47
      %s48 = sphi 0, %s45
      %s49 = sphi 0, %s48
      %s65 = sphi 0, %s49
      %s73 = sphi 0, %s75
      %s76 = sphi 0, %s73
      %s77 = sphi 0, %s76
      %s93 = sphi 0, %s77
      %s101 = sphi 0, %s103
      %s104 = sphi 0, %s101
      %s105 = sphi 0, %s104
      %s121 = sphi 0, %s105
      %s125 = sphi 0, %s125
      %s127 = sphi 0, %s125
      %s128 = sphi 0, %s127
      %s142 = sphi 0, %s128
      %s146 = sphi 0, %s146
      %s148 = sphi 0, %s146
      %s149 = sphi 0, %s148
      %s163 = sphi 0, %s149
      %s167 = sphi 0, %s167
      %s169 = sphi 0, %s167
      %s170 = sphi 0, %s169
      %s184 = sphi 0, %s170
      %s188 = sphi 0, %s188
      %s190 = sphi 0, %s188
      %s191 = sphi 0, %s190
      %s205 = sphi 0, %s191
      %s211 = sphi 0, %s213
      %s214 = sphi 0, %s211
      %s215 = sphi 0, %s214
      %s231 = sphi 0, %s215
    $region4: #{tpu_custom_call.1} parent=1 // loop_header_branch
      %26 = sbr.rel (%p24) target = $region8
    $region5: #{tpu_custom_call.1} parent=1 // loop_body
      %s28 = ssub.s32 %s23, 1
      %s29 = ssub.s32 %s23, 2
      %s36 = sadd.s32 1, %s31
      %p37 = scmp.ge.s32.totalorder %s36, 1
      %s38 = scalar_select %p37, 0, %s36
      %s39 = sadd.s32 1, %s30
      %s40 = scalar_select %p37, %s39, %s30
      %p41 = scmp.ge.s32.totalorder %s40, 2
      %s42 = scalar_select %p41, 0, %s40
      %s43 = ssub.s32 %s30, %s42
      %p44 = scmp.eq.s32.totalorder %s43, 0
      %s46 = sadd.s32 %s45, 1
      %s47 = scalar_select %p44, %s45, %s46
      %p50 = pneg %p44
      %p51 = scmp.eq.s32.totalorder %s23, 1
      %p52 = por %p50, %p51
      %p53 = scmp.ne.s32.totalorder %s45, %s48
      %p54 = scmp.eq.s32.totalorder %s23, 0
      %p55 = por %p53, %p54
      %p56 = scmp.ne.s32.totalorder %s45, %s48
      %p57 = scmp.eq.s32.totalorder %s28, 1
      %p58 = por %p56, %p57
      %p59 = scmp.ne.s32.totalorder %s48, %s49
      %p60 = scmp.eq.s32.totalorder %s28, 0
      %p61 = por %p59, %p60
      %p62 = scmp.ne.s32.totalorder %s48, %s49
      %p63 = scmp.eq.s32.totalorder %s29, 1
      %p64 = por %p62, %p63
      %p66 = scmp.ne.s32.totalorder %s49, %s65
      %p67 = scmp.eq.s32.totalorder %s29, 0
      %p68 = por %p66, %p67
      %s69 = ssub.s32 %s30, %s42
      %s70 = ssub.s32 %s31, %s38
      %s71 = sor.u32 %s69, %s70
      %p72 = scmp.eq.s32.totalorder %s71, 0
      %s74 = sadd.s32 %s73, 1
      %s75 = scalar_select %p72, %s73, %s74
      %p78 = pneg %p72
      %p79 = scmp.eq.s32.totalorder %s23, 1
      %p80 = por %p78, %p79
      %p81 = scmp.ne.s32.totalorder %s73, %s76
      %p82 = scmp.eq.s32.totalorder %s23, 0
      %p83 = por %p81, %p82
      %p84 = scmp.ne.s32.totalorder %s73, %s76
      %p85 = scmp.eq.s32.totalorder %s28, 1
      %p86 = por %p84, %p85
      %p87 = scmp.ne.s32.totalorder %s76, %s77
      %p88 = scmp.eq.s32.totalorder %s28, 0
      %p89 = por %p87, %p88
      %p90 = scmp.ne.s32.totalorder %s76, %s77
      %p91 = scmp.eq.s32.totalorder %s29, 1
      %p92 = por %p90, %p91
      %p94 = scmp.ne.s32.totalorder %s77, %s93
      %p95 = scmp.eq.s32.totalorder %s29, 0
      %p96 = por %p94, %p95
      %s97 = ssub.s32 %s30, %s42
      %s98 = ssub.s32 %s31, %s38
      %s99 = sor.u32 %s97, %s98
      %p100 = scmp.eq.s32.totalorder %s99, 0
      %s102 = sadd.s32 %s101, 1
      %s103 = scalar_select %p100, %s101, %s102
      %p106 = pneg %p100
      %p107 = scmp.eq.s32.totalorder %s23, 1
      %p108 = por %p106, %p107
      %p109 = scmp.ne.s32.totalorder %s101, %s104
      %p110 = scmp.eq.s32.totalorder %s23, 0
      %p111 = por %p109, %p110
      %p112 = scmp.ne.s32.totalorder %s101, %s104
      %p113 = scmp.eq.s32.totalorder %s28, 1
      %p114 = por %p112, %p113
      %p115 = scmp.ne.s32.totalorder %s104, %s105
      %p116 = scmp.eq.s32.totalorder %s28, 0
      %p117 = por %p115, %p116
      %p118 = scmp.ne.s32.totalorder %s104, %s105
      %p119 = scmp.eq.s32.totalorder %s29, 1
      %p120 = por %p118, %p119
      %p122 = scmp.ne.s32.totalorder %s105, %s121
      %p123 = scmp.eq.s32.totalorder %s29, 0
      %p124 = por %p122, %p123
      %s126 = sadd.s32 %s125, 1
      %p129 = scmp.eq.s32.totalorder %s23, 1
      %p130 = scmp.ne.s32.totalorder %s125, %s127
      %p131 = scmp.eq.s32.totalorder %s23, 0
      %p132 = por %p130, %p131
      %p133 = scmp.ne.s32.totalorder %s125, %s127
      %p134 = scmp.eq.s32.totalorder %s28, 1
      %p135 = por %p133, %p134
      %p136 = scmp.ne.s32.totalorder %s127, %s128
      %p137 = scmp.eq.s32.totalorder %s28, 0
      %p138 = por %p136, %p137
      %p139 = scmp.ne.s32.totalorder %s127, %s128
      %p140 = scmp.eq.s32.totalorder %s29, 1
      %p141 = por %p139, %p140
      %p143 = scmp.ne.s32.totalorder %s128, %s142
      %p144 = scmp.eq.s32.totalorder %s29, 0
      %p145 = por %p143, %p144
      %s147 = sadd.s32 %s146, 1
      %p150 = scmp.eq.s32.totalorder %s23, 1
      %p151 = scmp.ne.s32.totalorder %s146, %s148
      %p152 = scmp.eq.s32.totalorder %s23, 0
      %p153 = por %p151, %p152
      %p154 = scmp.ne.s32.totalorder %s146, %s148
      %p155 = scmp.eq.s32.totalorder %s28, 1
      %p156 = por %p154, %p155
      %p157 = scmp.ne.s32.totalorder %s148, %s149
      %p158 = scmp.eq.s32.totalorder %s28, 0
      %p159 = por %p157, %p158
      %p160 = scmp.ne.s32.totalorder %s148, %s149
      %p161 = scmp.eq.s32.totalorder %s29, 1
      %p162 = por %p160, %p161
      %p164 = scmp.ne.s32.totalorder %s149, %s163
      %p165 = scmp.eq.s32.totalorder %s29, 0
      %p166 = por %p164, %p165
      %s168 = sadd.s32 %s167, 1
      %p171 = scmp.eq.s32.totalorder %s23, 1
      %p172 = scmp.ne.s32.totalorder %s167, %s169
      %p173 = scmp.eq.s32.totalorder %s23, 0
      %p174 = por %p172, %p173
      %p175 = scmp.ne.s32.totalorder %s167, %s169
      %p176 = scmp.eq.s32.totalorder %s28, 1
      %p177 = por %p175, %p176
      %p178 = scmp.ne.s32.totalorder %s169, %s170
      %p179 = scmp.eq.s32.totalorder %s28, 0
      %p180 = por %p178, %p179
      %p181 = scmp.ne.s32.totalorder %s169, %s170
      %p182 = scmp.eq.s32.totalorder %s29, 1
      %p183 = por %p181, %p182
      %p185 = scmp.ne.s32.totalorder %s170, %s184
      %p186 = scmp.eq.s32.totalorder %s29, 0
      %p187 = por %p185, %p186
      %s189 = sadd.s32 %s188, 1
      %p192 = scmp.eq.s32.totalorder %s23, 1
      %p193 = scmp.ne.s32.totalorder %s188, %s190
      %p194 = scmp.eq.s32.totalorder %s23, 0
      %p195 = por %p193, %p194
      %p196 = scmp.ne.s32.totalorder %s188, %s190
      %p197 = scmp.eq.s32.totalorder %s28, 1
      %p198 = por %p196, %p197
      %p199 = scmp.ne.s32.totalorder %s190, %s191
      %p200 = scmp.eq.s32.totalorder %s28, 0
      %p201 = por %p199, %p200
      %p202 = scmp.ne.s32.totalorder %s190, %s191
      %p203 = scmp.eq.s32.totalorder %s29, 1
      %p204 = por %p202, %p203
      %p206 = scmp.ne.s32.totalorder %s191, %s205
      %p207 = scmp.eq.s32.totalorder %s29, 0
      %p208 = por %p206, %p207
      %s209 = ssub.s32 %s30, %s42
      %p210 = scmp.eq.s32.totalorder %s209, 0
      %s212 = sadd.s32 %s211, 1
      %s213 = scalar_select %p210, %s211, %s212
      %p216 = pneg %p210
      %p217 = scmp.eq.s32.totalorder %s23, 1
      %p218 = por %p216, %p217
      %p219 = scmp.ne.s32.totalorder %s211, %s214
      %p220 = scmp.eq.s32.totalorder %s23, 0
      %p221 = por %p219, %p220
      %p222 = scmp.ne.s32.totalorder %s211, %s214
      %p223 = scmp.eq.s32.totalorder %s28, 1
      %p224 = por %p222, %p223
      %p225 = scmp.ne.s32.totalorder %s214, %s215
      %p226 = scmp.eq.s32.totalorder %s28, 0
      %p227 = por %p225, %p226
      %p228 = scmp.ne.s32.totalorder %s214, %s215
      %p229 = scmp.eq.s32.totalorder %s29, 1
      %p230 = por %p228, %p229
      %p232 = scmp.ne.s32.totalorder %s215, %s231
      %p233 = scmp.eq.s32.totalorder %s29, 0
      %p234 = por %p232, %p233
      %p235 = scmp.le.s32.totalorder 1, %s23
      %p236 = scmp.lt.s32.totalorder %s23, 3
      %p237 = pnand %p235, %p236
      %p238 = pneg %p237
      // Predicated region
      $region9: #{tpu_custom_call.1} parent=5 // pred_check
        _
      $region10: #{tpu_custom_call.1} parent=5 // pred_check_branch
        %240 = sbr.rel (%p237) target = $region12
      $region11: #{tpu_custom_call.1} parent=5 // pred_region
        %s241 = ssub.s32 %s23, 1
        // Predicated region
        $region13: #{tpu_custom_call.1} parent=11 // pred_check
          %p242 = pneg %p138
        $region14: #{tpu_custom_call.1} parent=11 // pred_check_branch
          %244 = sbr.rel (%p242) target = $region16
        $region15: #{tpu_custom_call.1} parent=11 // pred_region
          %s246 = ssub.s32 512, 512
          %247 = vsyncadd [#allocation13], %s246
          %s248 = sshll.u32 [#allocation12], 4
          %s249 = int_to_ptr.vmem [resolvable:$true] %s248
          %254 = dma.hbm_to_vmem [thread:$0]  %s3, 512, %s249, [#allocation13], 128, 128, 8
        $region16: #{tpu_custom_call.1} parent=11 // pred_fallthru
          _
        // Predicated region
        $region17: #{tpu_custom_call.1} parent=11 // pred_check
          %p255 = pneg %p159
        $region18: #{tpu_custom_call.1} parent=11 // pred_check_branch
          %257 = sbr.rel (%p255) target = $region20
        $region19: #{tpu_custom_call.1} parent=11 // pred_region
          _
        $region20: #{tpu_custom_call.1} parent=11 // pred_fallthru
          _
        // Predicated region
        $region21: #{tpu_custom_call.1} parent=11 // pred_check
          %p258 = pneg %p180
        $region22: #{tpu_custom_call.1} parent=11 // pred_check_branch
          %260 = sbr.rel (%p258) target = $region24
        $region23: #{tpu_custom_call.1} parent=11 // pred_region
          %s262 = ssub.s32 512, 512
          %263 = vsyncadd [#allocation13], %s262
          %s264 = sshll.u32 [#allocation14], 4
          %s265 = int_to_ptr.vmem [resolvable:$true] %s264
          %270 = dma.hbm_to_vmem [thread:$0]  %s5, 512, %s265, [#allocation13], 128, 128, 8
        $region24: #{tpu_custom_call.1} parent=11 // pred_fallthru
          _
        // Predicated region
        $region25: #{tpu_custom_call.1} parent=11 // pred_check
          %p271 = pneg %p201
        $region26: #{tpu_custom_call.1} parent=11 // pred_check_branch
          %273 = sbr.rel (%p271) target = $region28
        $region27: #{tpu_custom_call.1} parent=11 // pred_region
          _
        $region28: #{tpu_custom_call.1} parent=11 // pred_fallthru
          _
      $region12: #{tpu_custom_call.1} parent=5 // pred_fallthru
        _
      %p274 = scmp.lt.s32.totalorder %s23, 2
      // Predicated region
      $region29: #{tpu_custom_call.1} parent=5 // pred_check
        %p275 = pneg %p274
      $region30: #{tpu_custom_call.1} parent=5 // pred_check_branch
        %277 = sbr.rel (%p275) target = $region32
      $region31: #{tpu_custom_call.1} parent=5 // pred_region
        // Predicated region
        $region33: #{tpu_custom_call.1} parent=31 // pred_check
          %p278 = pneg %p55
        $region34: #{tpu_custom_call.1} parent=31 // pred_check_branch
          %280 = sbr.rel (%p278) target = $region36
        $region35: #{tpu_custom_call.1} parent=31 // pred_region
          %s281 = sand.u32 %s45, 1
          %s282 = scalar_lea.sflag [#allocation7], %s281
          %s283 = sand.u32 %s45, 1
          %s284 = smul.addr %s283, 8
          %s285 = scalar_lea.vmem [#allocation6], %s284
          %s287 = ssub.s32 128, 128
          %288 = vsyncadd %s282, %s287
          %s289 = smul.addr %s30, 128
          %s290 = scalar_lea.hbm %s0, %s289
          %s292 = sshll.u32 %s285, 4
          %s293 = int_to_ptr.vmem [resolvable:$true] %s292
          %295 = dma.hbm_to_vmem [thread:$0]  %s290, 128, %s293, %s282
        $region36: #{tpu_custom_call.1} parent=31 // pred_fallthru
          _
        // Predicated region
        $region37: #{tpu_custom_call.1} parent=31 // pred_check
          %p296 = pneg %p83
        $region38: #{tpu_custom_call.1} parent=31 // pred_check_branch
          %298 = sbr.rel (%p296) target = $region40
        $region39: #{tpu_custom_call.1} parent=31 // pred_region
          %s299 = sand.u32 %s23, 1
          %s300 = scalar_lea.sflag [#allocation10], %s299
          %s301 = sand.u32 %s73, 1
          %s302 = smul.addr %s301, 8
          %s303 = scalar_lea.vmem [#allocation9], %s302
          %s305 = ssub.s32 128, 128
          %306 = vsyncadd %s300, %s305
          %s307 = sadd.s32 %s31, %s30
          %s308 = smul.addr %s307, 128
          %s309 = scalar_lea.hbm %s1, %s308
          %s311 = sshll.u32 %s303, 4
          %s312 = int_to_ptr.vmem [resolvable:$true] %s311
          %314 = dma.hbm_to_vmem [thread:$0]  %s309, 128, %s312, %s300
        $region40: #{tpu_custom_call.1} parent=31 // pred_fallthru
          _
        // Predicated region
        $region41: #{tpu_custom_call.1} parent=31 // pred_check
          %p315 = pneg %p111
        $region42: #{tpu_custom_call.1} parent=31 // pred_check_branch
          %317 = sbr.rel (%p315) target = $region44
        $region43: #{tpu_custom_call.1} parent=31 // pred_region
          %s318 = sand.u32 %s23, 1
          %s319 = scalar_lea.sflag [#allocation10], %s318
          %s320 = sand.u32 %s101, 1
          %s321 = smul.addr %s320, 8
          %s322 = scalar_lea.vmem [#allocation11], %s321
          %s324 = ssub.s32 128, 128
          %325 = vsyncadd %s319, %s324
          %s326 = sadd.s32 %s31, %s30
          %s327 = smul.addr %s326, 128
          %s328 = scalar_lea.hbm %s2, %s327
          %s330 = sshll.u32 %s322, 4
          %s331 = int_to_ptr.vmem [resolvable:$true] %s330
          %333 = dma.hbm_to_vmem [thread:$0]  %s328, 128, %s331, %s319
        $region44: #{tpu_custom_call.1} parent=31 // pred_fallthru
          _
      $region32: #{tpu_custom_call.1} parent=5 // pred_fallthru
        _
      %p334 = scmp.le.s32.totalorder 1, %s23
      %p335 = scmp.lt.s32.totalorder %s23, 3
      %p336 = pnand %p334, %p335
      %p337 = pneg %p336
      // Predicated region
      $region45: #{tpu_custom_call.1} parent=5 // pred_check
        _
      $region46: #{tpu_custom_call.1} parent=5 // pred_check_branch
        %339 = sbr.rel (%p336) target = $region48
      $region47: #{tpu_custom_call.1} parent=5 // pred_region
        %s340 = ssub.s32 %s23, 1
        %s341 = sand.u32 %s48, 1
        %s342 = scalar_lea.sflag [#allocation7], %s341
        %s343 = sand.u32 %s48, 1
        %s344 = smul.addr %s343, 8
        %s345 = scalar_lea.vmem [#allocation6], %s344
        // Predicated region
        $region49: #{tpu_custom_call.1} parent=47 // pred_check
          %p346 = pneg %p61
        $region50: #{tpu_custom_call.1} parent=47 // pred_check_branch
          %348 = sbr.rel (%p346) target = $region52
        $region51: #{tpu_custom_call.1} parent=47 // pred_region
          %349 = dma.done %s342, 128
        $region52: #{tpu_custom_call.1} parent=47 // pred_fallthru
          _
        %s350 = sand.u32 %s28, 1
        %s351 = scalar_lea.sflag [#allocation10], %s350
        %s352 = sand.u32 %s76, 1
        %s353 = smul.addr %s352, 8
        %s354 = scalar_lea.vmem [#allocation9], %s353
        // Predicated region
        $region53: #{tpu_custom_call.1} parent=47 // pred_check
          %p355 = pneg %p89
        $region54: #{tpu_custom_call.1} parent=47 // pred_check_branch
          %357 = sbr.rel (%p355) target = $region56
        $region55: #{tpu_custom_call.1} parent=47 // pred_region
          %358 = dma.done %s351, 128
        $region56: #{tpu_custom_call.1} parent=47 // pred_fallthru
          _
        %s359 = sand.u32 %s28, 1
        %s360 = scalar_lea.sflag [#allocation10], %s359
        %s361 = sand.u32 %s104, 1
        %s362 = smul.addr %s361, 8
        %s363 = scalar_lea.vmem [#allocation11], %s362
        // Predicated region
        $region57: #{tpu_custom_call.1} parent=47 // pred_check
          %p364 = pneg %p117
        $region58: #{tpu_custom_call.1} parent=47 // pred_check_branch
          %366 = sbr.rel (%p364) target = $region60
        $region59: #{tpu_custom_call.1} parent=47 // pred_region
          %367 = dma.done %s360, 128
        $region60: #{tpu_custom_call.1} parent=47 // pred_fallthru
          _
        // Predicated region
        $region61: #{tpu_custom_call.1} parent=47 // pred_check
          %p368 = pneg %p138
        $region62: #{tpu_custom_call.1} parent=47 // pred_check_branch
          %370 = sbr.rel (%p368) target = $region64
        $region63: #{tpu_custom_call.1} parent=47 // pred_region
          %371 = dma.done [#allocation13], 512
        $region64: #{tpu_custom_call.1} parent=47 // pred_fallthru
          _
        // Predicated region
        $region65: #{tpu_custom_call.1} parent=47 // pred_check
          %p372 = pneg %p180
        $region66: #{tpu_custom_call.1} parent=47 // pred_check_branch
          %374 = sbr.rel (%p372) target = $region68
        $region67: #{tpu_custom_call.1} parent=47 // pred_region
          %375 = dma.done [#allocation13], 512
        $region68: #{tpu_custom_call.1} parent=47 // pred_fallthru
          _
        %s376 = sand.u32 %s48, 1
        %s377 = scalar_lea.sflag [#allocation7], %s376
        %s378 = sand.u32 %s48, 1
        %s379 = smul.addr %s378, 8
        %s380 = scalar_lea.vmem [#allocation6], %s379
        %p381 = pneg %p61
        %p382 = pneg %p58
        %s383 = sand.u32 %s28, 1
        %s384 = scalar_lea.sflag [#allocation10], %s383
        %s385 = sand.u32 %s76, 1
        %s386 = smul.addr %s385, 8
        %s387 = scalar_lea.vmem [#allocation9], %s386
        %p388 = pneg %p89
        %p389 = pneg %p86
        %s390 = sand.u32 %s28, 1
        %s391 = scalar_lea.sflag [#allocation10], %s390
        %s392 = sand.u32 %s104, 1
        %s393 = smul.addr %s392, 8
        %s394 = scalar_lea.vmem [#allocation11], %s393
        %p395 = pneg %p117
        %p396 = pneg %p114
        %p397 = pneg %p138
        %p398 = pneg %p135
        %p399 = pneg %p159
        %p400 = pneg %p156
        %p401 = pneg %p180
        %p402 = pneg %p177
        %p403 = pneg %p201
        %p404 = pneg %p198
        %p405 = pneg %p227
        %p406 = pneg %p224
        %s407 = sand.u32 %s214, 1
        %s408 = scalar_lea.sflag [#allocation8], %s407
        %s409 = sand.u32 %s214, 1
        %s410 = smul.addr %s409, 8
        %s411 = scalar_lea.vmem [#allocation15], %s410
        %p412 = scmp.eq.s32.totalorder %s33, 0
        // Predicated region
        $region69: #{tpu_custom_call.1} parent=47 // pred_check
          %p413 = pneg %p412
        $region70: #{tpu_custom_call.1} parent=47 // pred_check_branch
          %415 = sbr.rel (%p413) target = $region72
        $region71: #{tpu_custom_call.1} parent=47 // pred_region
          %v416 = vld [vmem:[%s345] sm:$0xff]
          %v417 = vld [vmem:[#allocation12] sm:$0xff]
          %v418 = vld [vmem:[#allocation12 + $0x8] sm:$0xff]
          %v419 = vld [vmem:[#allocation12 + $0x10] sm:$0xff]
          %v420 = vld [vmem:[#allocation12 + $0x18] sm:$0xff]
          %v421 = vld [vmem:[%s4] sm:$0x1]
          %v423 = vlaneseq
          %v424 = vshrl.u32 %v423, 7
          %v425 = vsub.s32 0, %v424
          %v426 = vrot.slane %v421, %v425
          %vm428 = vcmask 261120
          %v430 = vsel %vm428, %v416, 0
          %432 = vmatprep.subr.mxu0 0.0
          %433 = vmatpush1.msra.mxu0 %v417
          %434 = vmatprep.subr.mxu0 0.0
          %435 = vmatpush1.msra.mxu0 %v418
          %436 = vmatprep.subr.mxu0 0.0
          %437 = vmatpush1.msra.mxu0 %v419
          %438 = vmatprep.subr.mxu0 0.0
          %439 = vmatpush1.msra.mxu0 %v420
          %440 = vmatprep.subr.mxu0 0.0
          %441 = vmatpush1.msra.mxu0 0.0
          %442 = vmatprep.subr.mxu0 0.0
          %443 = vmatpush1.msra.mxu0 0.0
          %444 = vmatprep.subr.mxu0 0.0
          %445 = vmatpush1.msra.mxu0 0.0
          %446 = vmatprep.subr.mxu0 0.0
          %447 = vmatpush1.msra.mxu0 0.0
          %448 = vmatprep.subr.mxu0 0.0
          %449 = vmatpush1.msra.mxu0 0.0
          %450 = vmatprep.subr.mxu0 0.0
          %451 = vmatpush1.msra.mxu0 0.0
          %452 = vmatprep.subr.mxu0 0.0
          %453 = vmatpush1.msra.mxu0 0.0
          %454 = vmatprep.subr.mxu0 0.0
          %455 = vmatpush1.msra.mxu0 0.0
          %456 = vmatprep.subr.mxu0 0.0
          %457 = vmatpush1.msra.mxu0 0.0
          %458 = vmatprep.subr.mxu0 0.0
          %459 = vmatpush1.msra.mxu0 0.0
          %460 = vmatprep.subr.mxu0 0.0
          %461 = vmatpush1.msra.mxu0 0.0
          %462 = vmatprep.subr.mxu0 0.0
          %463 = vmatpush1.msra.mxu0 0.0
          %464 = vmatprep.subr.mxu0 0.0
          %465 = vmatpush1.msra.mxu0 0.0
          %466 = vmatprep.subr.mxu0 0.0
          %467 = vmatpush1.msra.mxu0 0.0
          %468 = vmatprep.subr.mxu0 0.0
          %469 = vmatpush1.msra.mxu0 0.0
          %470 = vmatprep.subr.mxu0 0.0
          %471 = vmatpush1.msra.mxu0 0.0
          %472 = vmatprep.subr.mxu0 0.0
          %473 = vmatpush1.msra.mxu0 0.0
          %474 = vmatprep.subr.mxu0 0.0
          %475 = vmatpush1.msra.mxu0 0.0
          %476 = vmatprep.subr.mxu0 0.0
          %477 = vmatpush1.msra.mxu0 0.0
          %478 = vmatprep.subr.mxu0 0.0
          %479 = vmatpush1.msra.mxu0 0.0
          %480 = vmatprep.subr.mxu0 0.0
          %481 = vmatpush1.msra.mxu0 0.0
          %482 = vmatprep.subr.mxu0 0.0
          %483 = vmatpush1.msra.mxu0 0.0
          %484 = vmatprep.subr.mxu0 0.0
          %485 = vmatpush1.msra.mxu0 0.0
          %486 = vmatprep.subr.mxu0 0.0
          %487 = vmatpush1.msra.mxu0 0.0
          %488 = vmatprep.subr.mxu0 0.0
          %489 = vmatpush1.msra.mxu0 0.0
          %490 = vmatprep.subr.mxu0 0.0
          %491 = vmatpush1.msra.mxu0 0.0
          %492 = vmatprep.subr.mxu0 0.0
          %493 = vmatpush1.msra.mxu0 0.0
          %494 = vmatprep.subr.mxu0 0.0
          %495 = vmatpush1.msra.mxu0 0.0
          %496 = vmatprep.mubr.f32.mxu0 0.0
          %497 = vmatmul.mubr.f32.gmra.mrb[0].mxu0 %v430
          %v498 = vpop.f32.mrb[0].mxu0
          %v499 = vadd.f32 %v426, %v498
          %v500 = vpop.f32.mrb[0].mxu0
          %501 = vdwg.mxu0
          %502 = vst.msk [vmem:[#allocation2] sm:$0xff] %vm428, %v499
          %vm503 = vcmask 7168
          %504 = vst.msk [vmem:[#allocation3] sm:$0xff] %vm503, -inf
          %505 = vst.msk [vmem:[#allocation4] sm:$0xff] %vm503, 0.0
          %506 = vst.msk [vmem:[#allocation5] sm:$0xff] %vm428, 0.0
        $region72: #{tpu_custom_call.1} parent=47 // pred_fallthru
          _
        %v507 = vld [vmem:[%s354] sm:$0xff]
        %v508 = vld [vmem:[#allocation14] sm:$0xff]
        %v509 = vld [vmem:[#allocation14 + $0x8] sm:$0xff]
        %v510 = vld [vmem:[#allocation14 + $0x10] sm:$0xff]
        %v511 = vld [vmem:[#allocation14 + $0x18] sm:$0xff]
        %v512 = vld [vmem:[%s6] sm:$0x1]
        %v514 = vlaneseq
        %v515 = vshrl.u32 %v514, 7
        %v516 = vsub.s32 0, %v515
        %v517 = vrot.slane %v512, %v516
        %vm519 = vcmask 261120
        %v521 = vsel %vm519, %v507, 0
        %523 = vmatprep.subr.mxu0 0.0
        %524 = vmatpush1.msra.mxu0 %v508
        %525 = vmatprep.subr.mxu0 0.0
        %526 = vmatpush1.msra.mxu0 %v509
        %527 = vmatprep.subr.mxu0 0.0
        %528 = vmatpush1.msra.mxu0 %v510
        %529 = vmatprep.subr.mxu0 0.0
        %530 = vmatpush1.msra.mxu0 %v511
        %531 = vmatprep.subr.mxu0 0.0
        %532 = vmatpush1.msra.mxu0 0.0
        %533 = vmatprep.subr.mxu0 0.0
        %534 = vmatpush1.msra.mxu0 0.0
        %535 = vmatprep.subr.mxu0 0.0
        %536 = vmatpush1.msra.mxu0 0.0
        %537 = vmatprep.subr.mxu0 0.0
        %538 = vmatpush1.msra.mxu0 0.0
        %539 = vmatprep.subr.mxu0 0.0
        %540 = vmatpush1.msra.mxu0 0.0
        %541 = vmatprep.subr.mxu0 0.0
        %542 = vmatpush1.msra.mxu0 0.0
        %543 = vmatprep.subr.mxu0 0.0
        %544 = vmatpush1.msra.mxu0 0.0
        %545 = vmatprep.subr.mxu0 0.0
        %546 = vmatpush1.msra.mxu0 0.0
        %547 = vmatprep.subr.mxu0 0.0
        %548 = vmatpush1.msra.mxu0 0.0
        %549 = vmatprep.subr.mxu0 0.0
        %550 = vmatpush1.msra.mxu0 0.0
        %551 = vmatprep.subr.mxu0 0.0
        %552 = vmatpush1.msra.mxu0 0.0
        %553 = vmatprep.subr.mxu0 0.0
        %554 = vmatpush1.msra.mxu0 0.0
        %555 = vmatprep.subr.mxu0 0.0
        %556 = vmatpush1.msra.mxu0 0.0
        %557 = vmatprep.subr.mxu0 0.0
        %558 = vmatpush1.msra.mxu0 0.0
        %559 = vmatprep.subr.mxu0 0.0
        %560 = vmatpush1.msra.mxu0 0.0
        %561 = vmatprep.subr.mxu0 0.0
        %562 = vmatpush1.msra.mxu0 0.0
        %563 = vmatprep.subr.mxu0 0.0
        %564 = vmatpush1.msra.mxu0 0.0
        %565 = vmatprep.subr.mxu0 0.0
        %566 = vmatpush1.msra.mxu0 0.0
        %567 = vmatprep.subr.mxu0 0.0
        %568 = vmatpush1.msra.mxu0 0.0
        %569 = vmatprep.subr.mxu0 0.0
        %570 = vmatpush1.msra.mxu0 0.0
        %571 = vmatprep.subr.mxu0 0.0
        %572 = vmatpush1.msra.mxu0 0.0
        %573 = vmatprep.subr.mxu0 0.0
        %574 = vmatpush1.msra.mxu0 0.0
        %575 = vmatprep.subr.mxu0 0.0
        %576 = vmatpush1.msra.mxu0 0.0
        %577 = vmatprep.subr.mxu0 0.0
        %578 = vmatpush1.msra.mxu0 0.0
        %579 = vmatprep.subr.mxu0 0.0
        %580 = vmatpush1.msra.mxu0 0.0
        %581 = vmatprep.subr.mxu0 0.0
        %582 = vmatpush1.msra.mxu0 0.0
        %583 = vmatprep.subr.mxu0 0.0
        %584 = vmatpush1.msra.mxu0 0.0
        %585 = vmatprep.subr.mxu0 0.0
        %586 = vmatpush1.msra.mxu0 0.0
        %587 = vmatprep.mubr.f32.mxu0 0.0
        %588 = vmatmul.mubr.f32.gmra.mrb[0].mxu0 %v521
        %v589 = vpop.f32.mrb[0].mxu0
        %v590 = vadd.f32 %v517, %v589
        %v591 = vpop.f32.mrb[0].mxu0
        %592 = vdwg.mxu0
        %v593 = vld [vmem:[#allocation2] sm:$0xff]
        %v595 = vsel %vm519, %v593, 0
        %v598 = vsel %vm519, %v590, 0
        %600 = vmatprep.subr.mxu0 0.0
        %601 = vmatpush1.xpose.msra.mxu0 %v598
        %602 = vmatprep.subr.mxu0 0.0
        %603 = vmatpush1.xpose.msra.mxu0 0.0
        %604 = vmatprep.subr.mxu0 0.0
        %605 = vmatpush1.xpose.msra.mxu0 0.0
        %606 = vmatprep.subr.mxu0 0.0
        %607 = vmatpush1.xpose.msra.mxu0 0.0
        %608 = vmatprep.subr.mxu0 0.0
        %609 = vmatpush1.xpose.msra.mxu0 0.0
        %610 = vmatprep.subr.mxu0 0.0
        %611 = vmatpush1.xpose.msra.mxu0 0.0
        %612 = vmatprep.subr.mxu0 0.0
        %613 = vmatpush1.xpose.msra.mxu0 0.0
        %614 = vmatprep.subr.mxu0 0.0
        %615 = vmatpush1.xpose.msra.mxu0 0.0
        %616 = vmatprep.subr.mxu0 0.0
        %617 = vmatpush1.xpose.msra.mxu0 0.0
        %618 = vmatprep.subr.mxu0 0.0
        %619 = vmatpush1.xpose.msra.mxu0 0.0
        %620 = vmatprep.subr.mxu0 0.0
        %621 = vmatpush1.xpose.msra.mxu0 0.0
        %622 = vmatprep.subr.mxu0 0.0
        %623 = vmatpush1.xpose.msra.mxu0 0.0
        %624 = vmatprep.subr.mxu0 0.0
        %625 = vmatpush1.xpose.msra.mxu0 0.0
        %626 = vmatprep.subr.mxu0 0.0
        %627 = vmatpush1.xpose.msra.mxu0 0.0
        %628 = vmatprep.subr.mxu0 0.0
        %629 = vmatpush1.xpose.msra.mxu0 0.0
        %630 = vmatprep.subr.mxu0 0.0
        %631 = vmatpush1.xpose.msra.mxu0 0.0
        %632 = vmatprep.subr.mxu0 0.0
        %633 = vmatpush1.xpose.msra.mxu0 0.0
        %634 = vmatprep.subr.mxu0 0.0
        %635 = vmatpush1.xpose.msra.mxu0 0.0
        %636 = vmatprep.subr.mxu0 0.0
        %637 = vmatpush1.xpose.msra.mxu0 0.0
        %638 = vmatprep.subr.mxu0 0.0
        %639 = vmatpush1.xpose.msra.mxu0 0.0
        %640 = vmatprep.subr.mxu0 0.0
        %641 = vmatpush1.xpose.msra.mxu0 0.0
        %642 = vmatprep.subr.mxu0 0.0
        %643 = vmatpush1.xpose.msra.mxu0 0.0
        %644 = vmatprep.subr.mxu0 0.0
        %645 = vmatpush1.xpose.msra.mxu0 0.0
        %646 = vmatprep.subr.mxu0 0.0
        %647 = vmatpush1.xpose.msra.mxu0 0.0
        %648 = vmatprep.subr.mxu0 0.0
        %649 = vmatpush1.xpose.msra.mxu0 0.0
        %650 = vmatprep.subr.mxu0 0.0
        %651 = vmatpush1.xpose.msra.mxu0 0.0
        %652 = vmatprep.subr.mxu0 0.0
        %653 = vmatpush1.xpose.msra.mxu0 0.0
        %654 = vmatprep.subr.mxu0 0.0
        %655 = vmatpush1.xpose.msra.mxu0 0.0
        %656 = vmatprep.subr.mxu0 0.0
        %657 = vmatpush1.xpose.msra.mxu0 0.0
        %658 = vmatprep.subr.mxu0 0.0
        %659 = vmatpush1.xpose.msra.mxu0 0.0
        %660 = vmatprep.subr.mxu0 0.0
        %661 = vmatpush1.xpose.msra.mxu0 0.0
        %662 = vmatprep.subr.mxu0 0.0
        %663 = vmatpush1.xpose.msra.mxu0 0.0
        %664 = vmatprep.mubr.f32.mxu0 0.0
        %665 = vmatmul.mubr.f32.gmra.mrb[0].mxu0 %v595
        %v666 = vpop.f32.mrb[0].mxu0
        %v667 = vadd.f32 0.0, %v666
        %v668 = vpop.f32.mrb[0].mxu0
        %669 = vdwg.mxu0
        %v670 = vld [vmem:[#allocation3] sm:$0xff]
        %vm671 = vcmask 64512
        %v672 = vsel %vm671, %v667, -inf
        %673 = vmax.xlane.f32.xlu0 %v672
        %v674 = vpop.xlane.xlu0 %673
        %v675 = vmax.f32 %v670, %v674
        %v676 = vsub.f32 %v670, %v675
        %v677 = vmul.f32 %v676, 1.442695
        %v678 = vpow.pop %v677
        %680 = vset.pattern.permute.xlu0 0
        %681 = vperm.xlu0 %680, %v675
        %v682 = vpop.permute.xlu0 %681
        %v684 = vsub.f32 %v667, %v682
        %v685 = vmul.f32 %v684, 1.442695
        %v686 = vpow.pop %v685
        %v687 = vld [vmem:[#allocation4] sm:$0xff]
        %v688 = vmul.f32 %v678, %v687
        %v689 = vsel %vm671, %v686, 0.0
        %690 = vadd.xlane.f32.xlu0 %v689
        %v691 = vpop.xlane.xlu0 %690
        %v692 = vadd.f32 %v688, %v691
        %vm693 = vcmask 7168
        %694 = vst.msk [vmem:[#allocation4] sm:$0xff] %vm693, %v692
        %v695 = vld [vmem:[#allocation5] sm:$0xff]
        %697 = vset.pattern.permute.xlu0 0
        %698 = vperm.xlu0 %697, %v678
        %v699 = vpop.permute.xlu0 %698
        %v701 = vmul.f32 %v699, %v695
        %v702 = vld [vmem:[%s363] sm:$0xff]
        %v704 = vsel %vm671, %v686, 0
        %706 = vmatprep.subr.mxu0 0.0
        %707 = vmatpush1.msra.mxu0 %v702
        %708 = vmatprep.subr.mxu0 0.0
        %709 = vmatpush1.msra.mxu0 0.0
        %710 = vmatprep.subr.mxu0 0.0
        %711 = vmatpush1.msra.mxu0 0.0
        %712 = vmatprep.subr.mxu0 0.0
        %713 = vmatpush1.msra.mxu0 0.0
        %714 = vmatprep.subr.mxu0 0.0
        %715 = vmatpush1.msra.mxu0 0.0
        %716 = vmatprep.subr.mxu0 0.0
        %717 = vmatpush1.msra.mxu0 0.0
        %718 = vmatprep.subr.mxu0 0.0
        %719 = vmatpush1.msra.mxu0 0.0
        %720 = vmatprep.subr.mxu0 0.0
        %721 = vmatpush1.msra.mxu0 0.0
        %722 = vmatprep.subr.mxu0 0.0
        %723 = vmatpush1.msra.mxu0 0.0
        %724 = vmatprep.subr.mxu0 0.0
        %725 = vmatpush1.msra.mxu0 0.0
        %726 = vmatprep.subr.mxu0 0.0
        %727 = vmatpush1.msra.mxu0 0.0
        %728 = vmatprep.subr.mxu0 0.0
        %729 = vmatpush1.msra.mxu0 0.0
        %730 = vmatprep.subr.mxu0 0.0
        %731 = vmatpush1.msra.mxu0 0.0
        %732 = vmatprep.subr.mxu0 0.0
        %733 = vmatpush1.msra.mxu0 0.0
        %734 = vmatprep.subr.mxu0 0.0
        %735 = vmatpush1.msra.mxu0 0.0
        %736 = vmatprep.subr.mxu0 0.0
        %737 = vmatpush1.msra.mxu0 0.0
        %738 = vmatprep.subr.mxu0 0.0
        %739 = vmatpush1.msra.mxu0 0.0
        %740 = vmatprep.subr.mxu0 0.0
        %741 = vmatpush1.msra.mxu0 0.0
        %742 = vmatprep.subr.mxu0 0.0
        %743 = vmatpush1.msra.mxu0 0.0
        %744 = vmatprep.subr.mxu0 0.0
        %745 = vmatpush1.msra.mxu0 0.0
        %746 = vmatprep.subr.mxu0 0.0
        %747 = vmatpush1.msra.mxu0 0.0
        %748 = vmatprep.subr.mxu0 0.0
        %749 = vmatpush1.msra.mxu0 0.0
        %750 = vmatprep.subr.mxu0 0.0
        %751 = vmatpush1.msra.mxu0 0.0
        %752 = vmatprep.subr.mxu0 0.0
        %753 = vmatpush1.msra.mxu0 0.0
        %754 = vmatprep.subr.mxu0 0.0
        %755 = vmatpush1.msra.mxu0 0.0
        %756 = vmatprep.subr.mxu0 0.0
        %757 = vmatpush1.msra.mxu0 0.0
        %758 = vmatprep.subr.mxu0 0.0
        %759 = vmatpush1.msra.mxu0 0.0
        %760 = vmatprep.subr.mxu0 0.0
        %761 = vmatpush1.msra.mxu0 0.0
        %762 = vmatprep.subr.mxu0 0.0
        %763 = vmatpush1.msra.mxu0 0.0
        %764 = vmatprep.subr.mxu0 0.0
        %765 = vmatpush1.msra.mxu0 0.0
        %766 = vmatprep.subr.mxu0 0.0
        %767 = vmatpush1.msra.mxu0 0.0
        %768 = vmatprep.subr.mxu0 0.0
        %769 = vmatpush1.msra.mxu0 0.0
        %770 = vmatprep.mubr.f32.mxu0 0.0
        %771 = vmatmul.mubr.f32.gmra.mrb[0].mxu0 %v704
        %v772 = vpop.f32.mrb[0].mxu0
        %v773 = vadd.f32 0.0, %v772
        %v774 = vpop.f32.mrb[0].mxu0
        %775 = vdwg.mxu0
        %v776 = vadd.f32 %v701, %v773
        %777 = vst.msk [vmem:[#allocation5] sm:$0xff] %vm519, %v776
        %778 = vst.msk [vmem:[#allocation3] sm:$0xff] %vm693, %v675
        // Predicated region
        $region73: #{tpu_custom_call.1} parent=47 // pred_check
          %p779 = pneg %p412
        $region74: #{tpu_custom_call.1} parent=47 // pred_check_branch
          %781 = sbr.rel (%p779) target = $region76
        $region75: #{tpu_custom_call.1} parent=47 // pred_region
          %v782 = vld [vmem:[#allocation4] sm:$0xff]
          %v783 = vrcp.pop %v782
          %v784 = vld [vmem:[#allocation5] sm:$0xff]
          %786 = vset.pattern.permute.xlu0 0
          %787 = vperm.xlu0 %786, %v783
          %v788 = vpop.permute.xlu0 %787
          %v790 = vmul.f32 %v784, %v788
          %791 = vst.msk [vmem:[%s411] sm:$0xff] %vm519, %v790
        $region76: #{tpu_custom_call.1} parent=47 // pred_fallthru
          _
        %s792 = sand.u32 %s214, 1
        %s793 = scalar_lea.sflag [#allocation8], %s792
        %s794 = sand.u32 %s214, 1
        %s795 = smul.addr %s794, 8
        %s796 = scalar_lea.vmem [#allocation15], %s795
        // Predicated region
        $region77: #{tpu_custom_call.1} parent=47 // pred_check
          %p797 = pneg %p224
        $region78: #{tpu_custom_call.1} parent=47 // pred_check_branch
          %799 = sbr.rel (%p797) target = $region80
        $region79: #{tpu_custom_call.1} parent=47 // pred_region
          %s801 = ssub.s32 128, 128
          %802 = vsyncadd %s793, %s801
          %s803 = smul.addr %s32, 128
          %s804 = scalar_lea.hbm %s7, %s803
          %s806 = sshll.u32 %s796, 4
          %s807 = int_to_ptr.vmem [resolvable:$true] %s806
          %809 = dma.vmem_to_hbm [thread:$0]  %s807, 128, %s804, %s793
        $region80: #{tpu_custom_call.1} parent=47 // pred_fallthru
          _
      $region48: #{tpu_custom_call.1} parent=5 // pred_fallthru
        _
      %p810 = scmp.le.s32.totalorder 2, %s23
      // Predicated region
      $region81: #{tpu_custom_call.1} parent=5 // pred_check
        %p811 = pneg %p810
      $region82: #{tpu_custom_call.1} parent=5 // pred_check_branch
        %813 = sbr.rel (%p811) target = $region84
      $region83: #{tpu_custom_call.1} parent=5 // pred_region
        %s814 = ssub.s32 %s23, 2
        // Predicated region
        $region85: #{tpu_custom_call.1} parent=83 // pred_check
          %p815 = pneg %p230
        $region86: #{tpu_custom_call.1} parent=83 // pred_check_branch
          %817 = sbr.rel (%p815) target = $region88
        $region87: #{tpu_custom_call.1} parent=83 // pred_region
          %s818 = sand.u32 %s215, 1
          %s819 = scalar_lea.sflag [#allocation8], %s818
          %s820 = sand.u32 %s215, 1
          %s821 = smul.addr %s820, 8
          %s822 = scalar_lea.vmem [#allocation15], %s821
          %823 = dma.done %s819, 128
        $region88: #{tpu_custom_call.1} parent=83 // pred_fallthru
          _
      $region84: #{tpu_custom_call.1} parent=5 // pred_fallthru
        _
    $region6: #{tpu_custom_call.1} parent=1 // loop_footer
      %s27 = sadd.s32 1, %s23
    $region7: #{tpu_custom_call.1} parent=1 // loop_footer_branch
      %22 = sbr.rel target = $region3
    $region8: #{tpu_custom_call.1} parent=1 // loop_exit
      _
    %824 = vsyncpa [#allocation7], 1
    %s825 = scalar_lea.sflag [#allocation7], 1
    %826 = vsyncpa %s825, 1
    %827 = vsyncpa [#allocation10], 1
    %s828 = scalar_lea.sflag [#allocation10], 1
    %829 = vsyncpa %s828, 1
    %830 = vsyncpa [#allocation13], 1
    %831 = vsyncpa [#allocation8], 1
    %s832 = scalar_lea.sflag [#allocation8], 1
    %833 = vsyncpa %s832, 1

</llo_original>
